<compile_context>
chip_gen: v5e
topology: v5e:2x2
jax: 0.10.0
libtpu: 0.0.40
codegen_flags: <defaults>
</compile_context>

<pallas_src>
import jax
import jax.numpy as jnp
from jax.experimental import pallas as pl
from jax.experimental.pallas import tpu as pltpu

X_DIM = 512      # fc1 input features
OUT_DIM = 2      # fc3 output features
LANE = 128
SUBLANE = 8


def _round_up(n, m):
    return -(-n // m) * m


# ---------------------------------------------------------------------------
# Kernels
# ---------------------------------------------------------------------------

def rnn_cell_kernel(x_ref, h_ref, w12_ref, b12_ref, w3_ref, b3_ref,
                    out_ref, state_ref):
    """One RNN step on padded, merged operands (whole-array VMEM blocks)."""
    # [x | h] -> (B_pad, 512 + nd_pad), single MXU pass for fc1+fc2.
    xh = jnp.concatenate([x_ref[...], h_ref[...]], axis=-1).astype(jnp.bfloat16)
    s = jnp.dot(xh, w12_ref[...], preferred_element_type=jnp.float32)
    s = jnp.maximum(s + b12_ref[...], 0.0)          # relu(fc2(h) + fc1(x))
    state_ref[...] = s
    out_ref[...] = jnp.dot(s.astype(jnp.bfloat16), w3_ref[...],
                           preferred_element_type=jnp.float32) + b3_ref[...]


def rnn_seq_kernel(x_ref, h0_ref, w12_ref, b12_ref, w3_ref, b3_ref,
                   out_ref, state_ref):
    """Fused recurrence: grid axis = timestep.

    Weights have constant block indices (stay VMEM-resident, DMA'd once);
    the carried state is the `state_ref` output block (constant block index
    across the "arbitrary" time axis => resident accumulator)."""
    t = pl.program_id(0)

    @pl.when(t == 0)
    def _():
        state_ref[...] = h0_ref[...]

    xh = jnp.concatenate([x_ref[...], state_ref[...]],
                         axis=-1).astype(jnp.bfloat16)
    s = jnp.dot(xh, w12_ref[...], preferred_element_type=jnp.float32)
    s = jnp.maximum(s + b12_ref[...], 0.0)
    state_ref[...] = s
    out_ref[...] = jnp.dot(s.astype(jnp.bfloat16), w3_ref[...],
                           preferred_element_type=jnp.float32) + b3_ref[...]


# ---------------------------------------------------------------------------
# Parameter prep / wrappers
# ---------------------------------------------------------------------------

def init_params(key, ndims):
    """nn.Linear-style init; weights stored as (in, out), biases as (1, out)."""
    def linear(key, fan_in, fan_out):
        kw, kb = jax.random.split(key)
        bound = 1.0 / jnp.sqrt(fan_in)
        w = jax.random.uniform(kw, (fan_in, fan_out), jnp.float32, -bound, bound)
        b = jax.random.uniform(kb, (1, fan_out), jnp.float32, -bound, bound)
        return w, b

    k1, k2, k3 = jax.random.split(key, 3)
    w1, b1 = linear(k1, X_DIM, ndims)   # fc1
    w2, b2 = linear(k2, ndims, ndims)   # fc2
    w3, b3 = linear(k3, ndims, OUT_DIM)  # fc3
    return (w1, b1, w2, b2, w3, b3)


def prepare_params(raw_params, ndims):
    """Merge fc1/fc2, zero-pad to lane/MXU-friendly shapes, weights -> bf16."""
    w1, b1, w2, b2, w3, b3 = raw_params
    nd_pad = _round_up(max(ndims, LANE), LANE)
    out_pad = _round_up(max(OUT_DIM, LANE), LANE)

    w12 = jnp.zeros((X_DIM + nd_pad, nd_pad), jnp.float32)
    w12 = w12.at[:X_DIM, :ndims].set(w1)
    w12 = w12.at[X_DIM:X_DIM + ndims, :ndims].set(w2)
    b12 = jnp.zeros((1, nd_pad), jnp.float32).at[:, :ndims].set(b1 + b2)

    w3p = jnp.zeros((nd_pad, out_pad), jnp.float32).at[:ndims, :OUT_DIM].set(w3)
    b3p = jnp.zeros((1, out_pad), jnp.float32).at[:, :OUT_DIM].set(b3)

    return (w12.astype(jnp.bfloat16), b12, w3p.astype(jnp.bfloat16), b3p)


@jax.jit
def rnn_single_forward(x, h, prepared):
    """Single cell step. x: (B, 512), h: (B, ndims) -> (out (B, 2), state (B, ndims))."""
    w12, b12, w3p, b3p = prepared
    B = x.shape[0]
    ndims = h.shape[1]
    nd_pad = w12.shape[1]
    out_pad = w3p.shape[1]
    b_pad = _round_up(B, SUBLANE)

    x_p = jnp.zeros((b_pad, X_DIM), jnp.float32).at[:B].set(x)
    h_p = jnp.zeros((b_pad, nd_pad), jnp.float32).at[:B, :ndims].set(h)

    out_p, state_p = pl.pallas_call(
        rnn_cell_kernel,
        out_shape=(jax.ShapeDtypeStruct((b_pad, out_pad), jnp.float32),
                   jax.ShapeDtypeStruct((b_pad, nd_pad), jnp.float32)),
        in_specs=[pl.BlockSpec(memory_space=pltpu.VMEM)] * 6,
        out_specs=(pl.BlockSpec(memory_space=pltpu.VMEM),
                   pl.BlockSpec(memory_space=pltpu.VMEM)),
        input_output_aliases={1: 1},   # reuse h's buffer for the new state
    )(x_p, h_p, w12, b12, w3p, b3p)

    return out_p[:B, :OUT_DIM], state_p[:B, :ndims]


@jax.jit
def rnn_sequence_forward(xs, h0, prepared):
    """Fused T-step recurrence in ONE pallas_call.

    xs: (T, B, 512), h0: (B, ndims) -> (outputs (T, B, 2), final state (B, ndims))."""
    w12, b12, w3p, b3p = prepared
    T, B, _ = xs.shape
    ndims = h0.shape[1]
    nd_pad = w12.shape[1]
    out_pad = w3p.shape[1]
    b_pad = _round_up(B, SUBLANE)

    xs_p = jnp.zeros((T, b_pad, X_DIM), jnp.float32).at[:, :B].set(xs)
    h_p = jnp.zeros((b_pad, nd_pad), jnp.float32).at[:B, :ndims].set(h0)

    outs_p, state_p = pl.pallas_call(
        rnn_seq_kernel,
        out_shape=(jax.ShapeDtypeStruct((T, b_pad, out_pad), jnp.float32),
                   jax.ShapeDtypeStruct((b_pad, nd_pad), jnp.float32)),
        grid=(T,),
        in_specs=[
            pl.BlockSpec((None, b_pad, X_DIM), lambda t: (t, 0, 0)),    # x_t streamed
            pl.BlockSpec((b_pad, nd_pad), lambda t: (0, 0)),            # h0 resident
            pl.BlockSpec((X_DIM + nd_pad, nd_pad), lambda t: (0, 0)),   # W12 resident
            pl.BlockSpec((1, nd_pad), lambda t: (0, 0)),                # b12 resident
            pl.BlockSpec((nd_pad, out_pad), lambda t: (0, 0)),          # W3 resident
            pl.BlockSpec((1, out_pad), lambda t: (0, 0)),               # b3 resident
        ],
        out_specs=(
            pl.BlockSpec((None, b_pad, out_pad), lambda t: (t, 0, 0)),  # per-step out
            pl.BlockSpec((b_pad, nd_pad), lambda t: (0, 0)),            # carried state
        ),
        compiler_params=pltpu.CompilerParams(
            dimension_semantics=("arbitrary",)),  # recurrence is sequential
    )(xs_p, h_p, w12, b12, w3p, b3p)

    return outs_p[:, :B, :OUT_DIM], state_p[:B, :ndims]


# ---------------------------------------------------------------------------
# Demo / correctness check
# ---------------------------------------------------------------------------

if __name__ == "__main__":
    B = 2
    ndims = 32
    T = 8

    key = jax.random.PRNGKey(0)
    kp, kx, ks = jax.random.split(key, 3)

    raw = init_params(kp, ndims)
    prepared = prepare_params(raw, ndims)

    x = jax.random.normal(kx, (B, X_DIM), jnp.float32)
    h = jnp.zeros((B, ndims), jnp.float32)   # init_hidden(batch_size)

    # --- single step --------------------------------------------------------
    out, state = rnn_single_forward(x, h, prepared)
    jax.block_until_ready((out, state))
    assert out.shape == (B, OUT_DIM) and state.shape == (B, ndims)

    w1, b1, w2, b2, w3, b3 = raw
    w12, b12, w3p, b3p = prepared
    nd_pad = w12.shape[1]
    b_pad = _round_up(B, SUBLANE)

    def ref_cell_padded(xp, hp):
        # Same quantized (bf16) weights / padded math as the kernel, in plain JAX.
        xh = jnp.concatenate([xp, hp], axis=-1).astype(jnp.bfloat16)
        s = jnp.maximum(
            jnp.dot(xh, w12, preferred_element_type=jnp.float32) + b12, 0.0)
        o = jnp.dot(s.astype(jnp.bfloat16), w3p,
                    preferred_element_type=jnp.float32) + b3p
        return o, s

    x_p = jnp.zeros((b_pad, X_DIM), jnp.float32).at[:B].set(x)
    h_p = jnp.zeros((b_pad, nd_pad), jnp.float32).at[:B, :ndims].set(h)
    ref_o_p, ref_s_p = ref_cell_padded(x_p, h_p)
    assert jnp.allclose(out, ref_o_p[:B, :OUT_DIM], atol=5e-3)
    assert jnp.allclose(state, ref_s_p[:B, :ndims], atol=5e-3)

    # loose check against the exact-f32 math of the original module
    ref_state_f32 = jnp.maximum((x @ w1 + b1) + (h @ w2 + b2), 0.0)
    ref_out_f32 = ref_state_f32 @ w3 + b3
    assert jnp.allclose(state, ref_state_f32, atol=5e-2, rtol=5e-2)
    assert jnp.allclose(out, ref_out_f32, atol=5e-2, rtol=5e-2)

    # --- fused T-step recurrence --------------------------------------------
    xs = jax.random.normal(ks, (T, B, X_DIM), jnp.float32)
    outs_seq, state_seq = rnn_sequence_forward(xs, h, prepared)
    jax.block_until_ready((outs_seq, state_seq))
    assert outs_seq.shape == (T, B, OUT_DIM) and state_seq.shape == (B, ndims)

    xs_p = jnp.zeros((T, b_pad, X_DIM), jnp.float32).at[:, :B].set(xs)

    def scan_step(hp, xp_t):
        o, s = ref_cell_padded(xp_t, hp)
        return s, o

    ref_final_p, ref_outs_p = jax.lax.scan(scan_step, h_p, xs_p)
    assert jnp.allclose(outs_seq, ref_outs_p[:, :B, :OUT_DIM], atol=5e-3)
    assert jnp.allclose(state_seq, ref_final_p[:B, :ndims], atol=5e-3)

    print("KERNEL_OK")
</pallas_src>

<mosaic_0001>
module attributes {stable_mosaic.version = 11 : i64} {
  func.func @rnn_cell_kernel(%arg0: memref<8x512xf32, #tpu.memory_space<vmem>>, %arg1: memref<8x128xf32, #tpu.memory_space<vmem>>, %arg2: memref<640x128xbf16, #tpu.memory_space<vmem>>, %arg3: memref<1x128xf32, #tpu.memory_space<vmem>>, %arg4: memref<128x128xbf16, #tpu.memory_space<vmem>>, %arg5: memref<1x128xf32, #tpu.memory_space<vmem>>, %arg6: memref<8x128xf32, #tpu.memory_space<vmem>>, %arg7: memref<8x128xf32, #tpu.memory_space<vmem>>) attributes {dimension_semantics = [], scalar_prefetch = 0 : i64, scratch_operands = 0 : i64, tpu.core_type = #tpu.core_type<tc>} {
    %c0 = arith.constant 0 : index
    %c0_0 = arith.constant 0 : index
    %0 = vector.load %arg0[%c0, %c0_0] : memref<8x512xf32, #tpu.memory_space<vmem>>, vector<8x512xf32>
    %c0_1 = arith.constant 0 : index
    %c0_2 = arith.constant 0 : index
    %1 = vector.load %arg1[%c0_1, %c0_2] : memref<8x128xf32, #tpu.memory_space<vmem>>, vector<8x128xf32>
    %2 = tpu.concatenate %0, %1 in 1 : vector<8x512xf32>, vector<8x128xf32> -> vector<8x640xf32>
    %3 = arith.truncf %2 : vector<8x640xf32> to vector<8x640xbf16>
    %c0_3 = arith.constant 0 : index
    %c0_4 = arith.constant 0 : index
    %4 = vector.load %arg2[%c0_3, %c0_4] : memref<640x128xbf16, #tpu.memory_space<vmem>>, vector<640x128xbf16>
    %cst = arith.constant dense<0.000000e+00> : vector<8x128xf32>
    %5 = tpu.matmul %3, %4, %cst {dimension_numbers = #tpu.dot_dimension_numbers<[1], [0], [0], [1], [0, 0, 1, 1], [], []>} : vector<8x640xbf16>, vector<640x128xbf16>, vector<8x128xf32> -> vector<8x128xf32>
    %c0_5 = arith.constant 0 : index
    %c0_6 = arith.constant 0 : index
    %6 = vector.load %arg3[%c0_5, %c0_6] : memref<1x128xf32, #tpu.memory_space<vmem>>, vector<1x128xf32>
    %7 = vector.broadcast %6 : vector<1x128xf32> to vector<8x128xf32>
    %8 = arith.addf %5, %7 : vector<8x128xf32>
    %cst_7 = arith.constant 0.000000e+00 : f32
    %9 = vector.broadcast %cst_7 : f32 to vector<8x128xf32>
    %10 = arith.maximumf %8, %9 : vector<8x128xf32>
    %c0_8 = arith.constant 0 : index
    %c0_9 = arith.constant 0 : index
    %11 = vector.load %arg7[%c0_8, %c0_9] : memref<8x128xf32, #tpu.memory_space<vmem>>, vector<8x128xf32>
    tpu.vector_store %arg7[%c0_8, %c0_9], %10 {strides = array<i32>} : memref<8x128xf32, #tpu.memory_space<vmem>>, vector<8x128xf32>,
    %12 = arith.truncf %10 : vector<8x128xf32> to vector<8x128xbf16>
    %c0_10 = arith.constant 0 : index
    %c0_11 = arith.constant 0 : index
    %13 = vector.load %arg4[%c0_10, %c0_11] : memref<128x128xbf16, #tpu.memory_space<vmem>>, vector<128x128xbf16>
    %cst_12 = arith.constant dense<0.000000e+00> : vector<8x128xf32>
    %14 = tpu.matmul %12, %13, %cst_12 {dimension_numbers = #tpu.dot_dimension_numbers<[1], [0], [0], [1], [0, 0, 1, 1], [], []>} : vector<8x128xbf16>, vector<128x128xbf16>, vector<8x128xf32> -> vector<8x128xf32>
    %c0_13 = arith.constant 0 : index
    %c0_14 = arith.constant 0 : index
    %15 = vector.load %arg5[%c0_13, %c0_14] : memref<1x128xf32, #tpu.memory_space<vmem>>, vector<1x128xf32>
    %16 = vector.broadcast %15 : vector<1x128xf32> to vector<8x128xf32>
    %17 = arith.addf %14, %16 : vector<8x128xf32>
    %c0_15 = arith.constant 0 : index
    %c0_16 = arith.constant 0 : index
    %18 = vector.load %arg6[%c0_15, %c0_16] : memref<8x128xf32, #tpu.memory_space<vmem>>, vector<8x128xf32>
    tpu.vector_store %arg6[%c0_15, %c0_16], %17 {strides = array<i32>} : memref<8x128xf32, #tpu.memory_space<vmem>>, vector<8x128xf32>,
    return
  }
}

</mosaic_0001>

<llo_original>
// kernel: rnn_single_forward.1
$region0: #{rnn_single_forward.1}
  #allocation0 [shape = 'u32[]', space=smem, size = 0x4, offset = 0x4, fixed_abs, tag = 'smem constant byte address 0x4 - core index']
  #allocation1 [shape = 'u32[72,128]{1,0:T(1,128)}', space=vmem, size = 0x9000, scoped, tag = 'internal scratch']
  %s0 = inlined_call_operand.vmem [shape: f32[8,512], index: 0, kind: input, shape index: {}]
  %s1 = inlined_call_operand.vmem [shape: f32[8,128], index: 1, kind: input, shape index: {}, may-alias: {1,7}]
  %s2 = inlined_call_operand.hbm [shape: bf16[640,128], index: 2, kind: input, shape index: {}]
  %s3 = inlined_call_operand.vmem [shape: f32[1,128], index: 3, kind: input, shape index: {}]
  %s4 = inlined_call_operand.hbm [shape: bf16[128,128], index: 4, kind: input, shape index: {}]
  %s5 = inlined_call_operand.vmem [shape: f32[1,128], index: 5, kind: input, shape index: {}]
  %s6 = inlined_call_operand.vmem [shape: f32[8,128], index: 6, kind: output, shape index: {0}]
  %s7 = inlined_call_operand.vmem [shape: f32[8,128], index: 7, kind: output, shape index: {1}, may-alias: {1,7}]
  %8 = xla_tuple %s6, %s7
  %s9 = sld [smem:[#allocation0]]
  $region50: #{rnn_single_forward.1} parent=0
    _
  %s11 = ssub.s32 1, %s9
  %s12 = scalar_select 0, %s11, %s9
  $region1: #{rnn_single_forward.1} parent=0
    #allocation2 [shape = 'u8[163840]{0}', space=vmem, size = 0x28000, scoped, tag = 'input window, operand 2, single buffered']
    #allocation3 [shape = 's32[1]{0}', space=sflag, size = 0x4, scoped, tag = 'scoped memory for rnn_single_forward.1']
    #allocation4 [shape = 'u8[32768]{0}', space=vmem, size = 0x8000, scoped, tag = 'input window, operand 4, single buffered']
    #allocation5 [shape = 's32[1]{0}', space=sflag, size = 0x4, scoped, tag = 'scoped memory for rnn_single_forward.1']
    %13 = vsyncpa [#allocation3], 0
    %14 = vsyncpa [#allocation5], 0
    // Predicated region
    $region2: #{rnn_single_forward.1} parent=1 // pred_check
      _
    $region3: #{rnn_single_forward.1} parent=1 // pred_check_branch
      %16 = sbr.rel (0) target = $region5
    $region4: #{rnn_single_forward.1} parent=1 // pred_region
      _
    $region5: #{rnn_single_forward.1} parent=1 // pred_fallthru
      _
    // Predicated region
    $region6: #{rnn_single_forward.1} parent=1 // pred_check
      _
    $region7: #{rnn_single_forward.1} parent=1 // pred_check_branch
      %18 = sbr.rel (0) target = $region9
    $region8: #{rnn_single_forward.1} parent=1 // pred_region
      _
    $region9: #{rnn_single_forward.1} parent=1 // pred_fallthru
      _
    // Predicated region
    $region10: #{rnn_single_forward.1} parent=1 // pred_check
      _
    $region11: #{rnn_single_forward.1} parent=1 // pred_check_branch
      %20 = sbr.rel (0) target = $region13
    $region12: #{rnn_single_forward.1} parent=1 // pred_region
      %22 = vsyncadd [#allocation3], 0
      %s23 = sshll.u32 %s2, 4
      %s24 = int_to_ptr.hbm [resolvable:$true] %s23
      %s25 = sshll.u32 [#allocation2], 4
      %s26 = int_to_ptr.vmem [resolvable:$true] %s25
      %31 = dma.hbm_to_vmem [thread:$0]  %s24, 5120, %s26, [#allocation3], 64, 64, 4
    $region13: #{rnn_single_forward.1} parent=1 // pred_fallthru
      _
    // Predicated region
    $region14: #{rnn_single_forward.1} parent=1 // pred_check
      _
    $region15: #{rnn_single_forward.1} parent=1 // pred_check_branch
      %33 = sbr.rel (0) target = $region17
    $region16: #{rnn_single_forward.1} parent=1 // pred_region
      _
    $region17: #{rnn_single_forward.1} parent=1 // pred_fallthru
      _
    // Predicated region
    $region18: #{rnn_single_forward.1} parent=1 // pred_check
      _
    $region19: #{rnn_single_forward.1} parent=1 // pred_check_branch
      %35 = sbr.rel (0) target = $region21
    $region20: #{rnn_single_forward.1} parent=1 // pred_region
      %37 = vsyncadd [#allocation5], 0
      %s38 = sshll.u32 %s4, 4
      %s39 = int_to_ptr.hbm [resolvable:$true] %s38
      %s40 = sshll.u32 [#allocation4], 4
      %s41 = int_to_ptr.vmem [resolvable:$true] %s40
      %46 = dma.hbm_to_vmem [thread:$0]  %s39, 1024, %s41, [#allocation5], 64, 64, 4
    $region21: #{rnn_single_forward.1} parent=1 // pred_fallthru
      _
    // Predicated region
    $region22: #{rnn_single_forward.1} parent=1 // pred_check
      _
    $region23: #{rnn_single_forward.1} parent=1 // pred_check_branch
      %48 = sbr.rel (0) target = $region25
    $region24: #{rnn_single_forward.1} parent=1 // pred_region
      _
    $region25: #{rnn_single_forward.1} parent=1 // pred_fallthru
      _
    // Predicated region
    $region26: #{rnn_single_forward.1} parent=1 // pred_check
      _
    $region27: #{rnn_single_forward.1} parent=1 // pred_check_branch
      %50 = sbr.rel (0) target = $region29
    $region28: #{rnn_single_forward.1} parent=1 // pred_region
      %52 = dma.done [#allocation3], 5120
    $region29: #{rnn_single_forward.1} parent=1 // pred_fallthru
      _
    // Predicated region
    $region30: #{rnn_single_forward.1} parent=1 // pred_check
      _
    $region31: #{rnn_single_forward.1} parent=1 // pred_check_branch
      %54 = sbr.rel (0) target = $region33
    $region32: #{rnn_single_forward.1} parent=1 // pred_region
      %56 = dma.done [#allocation5], 1024
    $region33: #{rnn_single_forward.1} parent=1 // pred_fallthru
      _
    %v57 = vld [vmem:[%s0] sm:$0xff]
    %v58 = vld [vmem:[%s0 + $0x8] sm:$0xff]
    %v59 = vld [vmem:[%s0 + $0x10] sm:$0xff]
    %v60 = vld [vmem:[%s0 + $0x18] sm:$0xff]
    %v61 = vld [vmem:[%s1] sm:$0xff]
    %v62 = vpack.c.bf16 %v57, %v57
    %v63 = vpack.c.bf16 %v58, %v58
    %v64 = vpack.c.bf16 %v59, %v59
    %v65 = vpack.c.bf16 %v60, %v60
    %v66 = vpack.c.bf16 %v61, %v61
    %v67 = vld [vmem:[#allocation2] sm:$0xf]
    %v68 = vld [vmem:[#allocation2 + $0x4] sm:$0xf]
    %v69 = vld [vmem:[#allocation2 + $0x8] sm:$0xf]
    %v70 = vld [vmem:[#allocation2 + $0xc] sm:$0xf]
    %v71 = vld [vmem:[#allocation2 + $0x10] sm:$0xf]
    %v72 = vld [vmem:[#allocation2 + $0x14] sm:$0xf]
    %v73 = vld [vmem:[#allocation2 + $0x18] sm:$0xf]
    %v74 = vld [vmem:[#allocation2 + $0x1c] sm:$0xf]
    %v75 = vld [vmem:[#allocation2 + $0x20] sm:$0xf]
    %v76 = vld [vmem:[#allocation2 + $0x24] sm:$0xf]
    %v77 = vld [vmem:[#allocation2 + $0x28] sm:$0xf]
    %v78 = vld [vmem:[#allocation2 + $0x2c] sm:$0xf]
    %v79 = vld [vmem:[#allocation2 + $0x30] sm:$0xf]
    %v80 = vld [vmem:[#allocation2 + $0x34] sm:$0xf]
    %v81 = vld [vmem:[#allocation2 + $0x38] sm:$0xf]
    %v82 = vld [vmem:[#allocation2 + $0x3c] sm:$0xf]
    %v83 = vld [vmem:[#allocation2 + $0x40] sm:$0xf]
    %v84 = vld [vmem:[#allocation2 + $0x44] sm:$0xf]
    %v85 = vld [vmem:[#allocation2 + $0x48] sm:$0xf]
    %v86 = vld [vmem:[#allocation2 + $0x4c] sm:$0xf]
    %v87 = vld [vmem:[#allocation2 + $0x50] sm:$0xf]
    %v88 = vld [vmem:[#allocation2 + $0x54] sm:$0xf]
    %v89 = vld [vmem:[#allocation2 + $0x58] sm:$0xf]
    %v90 = vld [vmem:[#allocation2 + $0x5c] sm:$0xf]
    %v91 = vld [vmem:[#allocation2 + $0x60] sm:$0xf]
    %v92 = vld [vmem:[#allocation2 + $0x64] sm:$0xf]
    %v93 = vld [vmem:[#allocation2 + $0x68] sm:$0xf]
    %v94 = vld [vmem:[#allocation2 + $0x6c] sm:$0xf]
    %v95 = vld [vmem:[#allocation2 + $0x70] sm:$0xf]
    %v96 = vld [vmem:[#allocation2 + $0x74] sm:$0xf]
    %v97 = vld [vmem:[#allocation2 + $0x78] sm:$0xf]
    %v98 = vld [vmem:[#allocation2 + $0x7c] sm:$0xf]
    %v99 = vld [vmem:[#allocation2 + $0x80] sm:$0xf]
    %v100 = vld [vmem:[#allocation2 + $0x84] sm:$0xf]
    %v101 = vld [vmem:[#allocation2 + $0x88] sm:$0xf]
    %v102 = vld [vmem:[#allocation2 + $0x8c] sm:$0xf]
    %v103 = vld [vmem:[#allocation2 + $0x90] sm:$0xf]
    %v104 = vld [vmem:[#allocation2 + $0x94] sm:$0xf]
    %v105 = vld [vmem:[#allocation2 + $0x98] sm:$0xf]
    %v106 = vld [vmem:[#allocation2 + $0x9c] sm:$0xf]
    %v107 = vld [vmem:[#allocation2 + $0xa0] sm:$0xf]
    %v108 = vld [vmem:[#allocation2 + $0xa4] sm:$0xf]
    %v109 = vld [vmem:[#allocation2 + $0xa8] sm:$0xf]
    %v110 = vld [vmem:[#allocation2 + $0xac] sm:$0xf]
    %v111 = vld [vmem:[#allocation2 + $0xb0] sm:$0xf]
    %v112 = vld [vmem:[#allocation2 + $0xb4] sm:$0xf]
    %v113 = vld [vmem:[#allocation2 + $0xb8] sm:$0xf]
    %v114 = vld [vmem:[#allocation2 + $0xbc] sm:$0xf]
    %v115 = vld [vmem:[#allocation2 + $0xc0] sm:$0xf]
    %v116 = vld [vmem:[#allocation2 + $0xc4] sm:$0xf]
    %v117 = vld [vmem:[#allocation2 + $0xc8] sm:$0xf]
    %v118 = vld [vmem:[#allocation2 + $0xcc] sm:$0xf]
    %v119 = vld [vmem:[#allocation2 + $0xd0] sm:$0xf]
    %v120 = vld [vmem:[#allocation2 + $0xd4] sm:$0xf]
    %v121 = vld [vmem:[#allocation2 + $0xd8] sm:$0xf]
    %v122 = vld [vmem:[#allocation2 + $0xdc] sm:$0xf]
    %v123 = vld [vmem:[#allocation2 + $0xe0] sm:$0xf]
    %v124 = vld [vmem:[#allocation2 + $0xe4] sm:$0xf]
    %v125 = vld [vmem:[#allocation2 + $0xe8] sm:$0xf]
    %v126 = vld [vmem:[#allocation2 + $0xec] sm:$0xf]
    %v127 = vld [vmem:[#allocation2 + $0xf0] sm:$0xf]
    %v128 = vld [vmem:[#allocation2 + $0xf4] sm:$0xf]
    %v129 = vld [vmem:[#allocation2 + $0xf8] sm:$0xf]
    %v130 = vld [vmem:[#allocation2 + $0xfc] sm:$0xf]
    %v131 = vld [vmem:[#allocation2 + $0x100] sm:$0xf]
    %v132 = vld [vmem:[#allocation2 + $0x104] sm:$0xf]
    %v133 = vld [vmem:[#allocation2 + $0x108] sm:$0xf]
    %v134 = vld [vmem:[#allocation2 + $0x10c] sm:$0xf]
    %v135 = vld [vmem:[#allocation2 + $0x110] sm:$0xf]
    %v136 = vld [vmem:[#allocation2 + $0x114] sm:$0xf]
    %v137 = vld [vmem:[#allocation2 + $0x118] sm:$0xf]
    %v138 = vld [vmem:[#allocation2 + $0x11c] sm:$0xf]
    %v139 = vld [vmem:[#allocation2 + $0x120] sm:$0xf]
    %v140 = vld [vmem:[#allocation2 + $0x124] sm:$0xf]
    %v141 = vld [vmem:[#allocation2 + $0x128] sm:$0xf]
    %v142 = vld [vmem:[#allocation2 + $0x12c] sm:$0xf]
    %v143 = vld [vmem:[#allocation2 + $0x130] sm:$0xf]
    %v144 = vld [vmem:[#allocation2 + $0x134] sm:$0xf]
    %v145 = vld [vmem:[#allocation2 + $0x138] sm:$0xf]
    %v146 = vld [vmem:[#allocation2 + $0x13c] sm:$0xf]
    %v147 = vld [vmem:[%s3] sm:$0x1]
    %v149 = vperm.slane %v147, 0
    %v231 = vunpack.c.l.b16 %v67
    %v232 = vunpack.c.l.b16 %v68
    %v233 = vunpack.c.l.b16 %v69
    %v234 = vunpack.c.l.b16 %v70
    %v235 = vunpack.c.l.b16 %v71
    %v236 = vunpack.c.l.b16 %v72
    %v237 = vunpack.c.l.b16 %v73
    %v238 = vunpack.c.l.b16 %v74
    %v239 = vunpack.c.l.b16 %v75
    %v240 = vunpack.c.l.b16 %v76
    %v241 = vunpack.c.l.b16 %v77
    %v242 = vunpack.c.l.b16 %v78
    %v243 = vunpack.c.l.b16 %v79
    %v244 = vunpack.c.l.b16 %v80
    %v245 = vunpack.c.l.b16 %v81
    %v246 = vunpack.c.l.b16 %v82
    %v247 = vunpack.c.l.b16 %v83
    %v248 = vunpack.c.l.b16 %v84
    %v249 = vunpack.c.l.b16 %v85
    %v250 = vunpack.c.l.b16 %v86
    %v251 = vunpack.c.l.b16 %v87
    %v252 = vunpack.c.l.b16 %v88
    %v253 = vunpack.c.l.b16 %v89
    %v254 = vunpack.c.l.b16 %v90
    %v255 = vunpack.c.l.b16 %v91
    %v256 = vunpack.c.l.b16 %v92
    %v257 = vunpack.c.l.b16 %v93
    %v258 = vunpack.c.l.b16 %v94
    %v259 = vunpack.c.l.b16 %v95
    %v260 = vunpack.c.l.b16 %v96
    %v261 = vunpack.c.l.b16 %v97
    %v262 = vunpack.c.l.b16 %v98
    %v263 = vunpack.c.l.b16 %v99
    %v264 = vunpack.c.l.b16 %v100
    %v265 = vunpack.c.l.b16 %v101
    %v266 = vunpack.c.l.b16 %v102
    %v267 = vunpack.c.l.b16 %v103
    %v268 = vunpack.c.l.b16 %v104
    %v269 = vunpack.c.l.b16 %v105
    %v270 = vunpack.c.l.b16 %v106
    %v271 = vunpack.c.l.b16 %v107
    %v272 = vunpack.c.l.b16 %v108
    %v273 = vunpack.c.l.b16 %v109
    %v274 = vunpack.c.l.b16 %v110
    %v275 = vunpack.c.l.b16 %v111
    %v276 = vunpack.c.l.b16 %v112
    %v277 = vunpack.c.l.b16 %v113
    %v278 = vunpack.c.l.b16 %v114
    %v279 = vunpack.c.l.b16 %v115
    %v280 = vunpack.c.l.b16 %v116
    %v281 = vunpack.c.l.b16 %v117
    %v282 = vunpack.c.l.b16 %v118
    %v283 = vunpack.c.l.b16 %v119
    %v284 = vunpack.c.l.b16 %v120
    %v285 = vunpack.c.l.b16 %v121
    %v286 = vunpack.c.l.b16 %v122
    %v287 = vunpack.c.l.b16 %v123
    %v288 = vunpack.c.l.b16 %v124
    %v289 = vunpack.c.l.b16 %v125
    %v290 = vunpack.c.l.b16 %v126
    %v291 = vunpack.c.l.b16 %v127
    %v292 = vunpack.c.l.b16 %v128
    %v293 = vunpack.c.l.b16 %v129
    %v294 = vunpack.c.l.b16 %v130
    %v295 = vunpack.c.l.b16 %v131
    %v296 = vunpack.c.l.b16 %v132
    %v297 = vunpack.c.l.b16 %v133
    %v298 = vunpack.c.l.b16 %v134
    %v299 = vunpack.c.l.b16 %v135
    %v300 = vunpack.c.l.b16 %v136
    %v301 = vunpack.c.l.b16 %v137
    %v302 = vunpack.c.l.b16 %v138
    %v303 = vunpack.c.l.b16 %v139
    %v304 = vunpack.c.l.b16 %v140
    %v305 = vunpack.c.l.b16 %v141
    %v306 = vunpack.c.l.b16 %v142
    %v307 = vunpack.c.l.b16 %v143
    %v308 = vunpack.c.l.b16 %v144
    %v309 = vunpack.c.l.b16 %v145
    %v310 = vunpack.c.l.b16 %v146
    %v311 = vpack.c.b16 %v232, %v231
    %v312 = vpack.c.b16 %v234, %v233
    %v313 = vpack.c.b16 %v236, %v235
    %v314 = vpack.c.b16 %v238, %v237
    %v315 = vpack.c.b16 %v240, %v239
    %v316 = vpack.c.b16 %v242, %v241
    %v317 = vpack.c.b16 %v244, %v243
    %v318 = vpack.c.b16 %v246, %v245
    %v319 = vpack.c.b16 %v248, %v247
    %v320 = vpack.c.b16 %v250, %v249
    %v321 = vpack.c.b16 %v252, %v251
    %v322 = vpack.c.b16 %v254, %v253
    %v323 = vpack.c.b16 %v256, %v255
    %v324 = vpack.c.b16 %v258, %v257
    %v325 = vpack.c.b16 %v260, %v259
    %v326 = vpack.c.b16 %v262, %v261
    %v327 = vpack.c.b16 %v264, %v263
    %v328 = vpack.c.b16 %v266, %v265
    %v329 = vpack.c.b16 %v268, %v267
    %v330 = vpack.c.b16 %v270, %v269
    %v331 = vpack.c.b16 %v272, %v271
    %v332 = vpack.c.b16 %v274, %v273
    %v333 = vpack.c.b16 %v276, %v275
    %v334 = vpack.c.b16 %v278, %v277
    %v335 = vpack.c.b16 %v280, %v279
    %v336 = vpack.c.b16 %v282, %v281
    %v337 = vpack.c.b16 %v284, %v283
    %v338 = vpack.c.b16 %v286, %v285
    %v339 = vpack.c.b16 %v288, %v287
    %v340 = vpack.c.b16 %v290, %v289
    %v341 = vpack.c.b16 %v292, %v291
    %v342 = vpack.c.b16 %v294, %v293
    %v343 = vpack.c.b16 %v296, %v295
    %v344 = vpack.c.b16 %v298, %v297
    %v345 = vpack.c.b16 %v300, %v299
    %v346 = vpack.c.b16 %v302, %v301
    %v347 = vpack.c.b16 %v304, %v303
    %v348 = vpack.c.b16 %v306, %v305
    %v349 = vpack.c.b16 %v308, %v307
    %v350 = vpack.c.b16 %v310, %v309
    %391 = vmatpush.bf16.msra.mxu0 %v318
    %392 = vmatpush.bf16.msra.mxu0 %v317
    %393 = vmatpush.bf16.msra.mxu0 %v316
    %394 = vmatpush.bf16.msra.mxu0 %v315
    %395 = vmatpush.bf16.msra.mxu0 %v314
    %396 = vmatpush.bf16.msra.mxu0 %v313
    %397 = vmatpush.bf16.msra.mxu0 %v312
    %398 = vmatpush.bf16.msra.mxu0 %v311
    %399 = vmatmul.bf16.gmra.mxu0 %v62
    %v400 = vpop.f32.mrf.mxu0
    %v401 = vadd.f32 %v149, %v400
    %v402 = vpop.f32.mrf.mxu0
    %403 = vdwg.mxu0
    %404 = vmatpush.bf16.msra.mxu0 %v326
    %405 = vmatpush.bf16.msra.mxu0 %v325
    %406 = vmatpush.bf16.msra.mxu0 %v324
    %407 = vmatpush.bf16.msra.mxu0 %v323
    %408 = vmatpush.bf16.msra.mxu0 %v322
    %409 = vmatpush.bf16.msra.mxu0 %v321
    %410 = vmatpush.bf16.msra.mxu0 %v320
    %411 = vmatpush.bf16.msra.mxu0 %v319
    %412 = vmatmul.bf16.gmra.mxu0 %v63
    %v413 = vpop.f32.mrf.mxu0
    %v414 = vadd.f32 %v401, %v413
    %v415 = vpop.f32.mrf.mxu0
    %416 = vdwg.mxu0
    %417 = vmatpush.bf16.msra.mxu0 %v334
    %418 = vmatpush.bf16.msra.mxu0 %v333
    %419 = vmatpush.bf16.msra.mxu0 %v332
    %420 = vmatpush.bf16.msra.mxu0 %v331
    %421 = vmatpush.bf16.msra.mxu0 %v330
    %422 = vmatpush.bf16.msra.mxu0 %v329
    %423 = vmatpush.bf16.msra.mxu0 %v328
    %424 = vmatpush.bf16.msra.mxu0 %v327
    %425 = vmatmul.bf16.gmra.mxu0 %v64
    %v426 = vpop.f32.mrf.mxu0
    %v427 = vadd.f32 %v414, %v426
    %v428 = vpop.f32.mrf.mxu0
    %429 = vdwg.mxu0
    %430 = vmatpush.bf16.msra.mxu0 %v342
    %431 = vmatpush.bf16.msra.mxu0 %v341
    %432 = vmatpush.bf16.msra.mxu0 %v340
    %433 = vmatpush.bf16.msra.mxu0 %v339
    %434 = vmatpush.bf16.msra.mxu0 %v338
    %435 = vmatpush.bf16.msra.mxu0 %v337
    %436 = vmatpush.bf16.msra.mxu0 %v336
    %437 = vmatpush.bf16.msra.mxu0 %v335
    %438 = vmatmul.bf16.gmra.mxu0 %v65
    %v439 = vpop.f32.mrf.mxu0
    %v440 = vadd.f32 %v427, %v439
    %v441 = vpop.f32.mrf.mxu0
    %442 = vdwg.mxu0
    %443 = vmatpush.bf16.msra.mxu0 %v350
    %444 = vmatpush.bf16.msra.mxu0 %v349
    %445 = vmatpush.bf16.msra.mxu0 %v348
    %446 = vmatpush.bf16.msra.mxu0 %v347
    %447 = vmatpush.bf16.msra.mxu0 %v346
    %448 = vmatpush.bf16.msra.mxu0 %v345
    %449 = vmatpush.bf16.msra.mxu0 %v344
    %450 = vmatpush.bf16.msra.mxu0 %v343
    %451 = vmatmul.bf16.gmra.mxu0 %v66
    %v452 = vpop.f32.mrf.mxu0
    %v453 = vadd.f32 %v440, %v452
    %v454 = vpop.f32.mrf.mxu0
    %455 = vdwg.mxu0
    %v456 = vmax.f32 %v453, 0.0
    %457 = vst [vmem:[%s7] sm:$0xff] %v456
    %v458 = vpack.c.bf16 %v456, %v456
    %v459 = vld [vmem:[#allocation4] sm:$0xf]
    %v460 = vld [vmem:[#allocation4 + $0x4] sm:$0xf]
    %v461 = vld [vmem:[#allocation4 + $0x8] sm:$0xf]
    %v462 = vld [vmem:[#allocation4 + $0xc] sm:$0xf]
    %v463 = vld [vmem:[#allocation4 + $0x10] sm:$0xf]
    %v464 = vld [vmem:[#allocation4 + $0x14] sm:$0xf]
    %v465 = vld [vmem:[#allocation4 + $0x18] sm:$0xf]
    %v466 = vld [vmem:[#allocation4 + $0x1c] sm:$0xf]
    %v467 = vld [vmem:[#allocation4 + $0x20] sm:$0xf]
    %v468 = vld [vmem:[#allocation4 + $0x24] sm:$0xf]
    %v469 = vld [vmem:[#allocation4 + $0x28] sm:$0xf]
    %v470 = vld [vmem:[#allocation4 + $0x2c] sm:$0xf]
    %v471 = vld [vmem:[#allocation4 + $0x30] sm:$0xf]
    %v472 = vld [vmem:[#allocation4 + $0x34] sm:$0xf]
    %v473 = vld [vmem:[#allocation4 + $0x38] sm:$0xf]
    %v474 = vld [vmem:[#allocation4 + $0x3c] sm:$0xf]
    %v475 = vld [vmem:[%s5] sm:$0x1]
    %v477 = vperm.slane %v475, 0
    %v495 = vunpack.c.l.b16 %v459
    %v496 = vunpack.c.l.b16 %v460
    %v497 = vunpack.c.l.b16 %v461
    %v498 = vunpack.c.l.b16 %v462
    %v499 = vunpack.c.l.b16 %v463
    %v500 = vunpack.c.l.b16 %v464
    %v501 = vunpack.c.l.b16 %v465
    %v502 = vunpack.c.l.b16 %v466
    %v503 = vunpack.c.l.b16 %v467
    %v504 = vunpack.c.l.b16 %v468
    %v505 = vunpack.c.l.b16 %v469
    %v506 = vunpack.c.l.b16 %v470
    %v507 = vunpack.c.l.b16 %v471
    %v508 = vunpack.c.l.b16 %v472
    %v509 = vunpack.c.l.b16 %v473
    %v510 = vunpack.c.l.b16 %v474
    %v511 = vpack.c.b16 %v496, %v495
    %v512 = vpack.c.b16 %v498, %v497
    %v513 = vpack.c.b16 %v500, %v499
    %v514 = vpack.c.b16 %v502, %v501
    %v515 = vpack.c.b16 %v504, %v503
    %v516 = vpack.c.b16 %v506, %v505
    %v517 = vpack.c.b16 %v508, %v507
    %v518 = vpack.c.b16 %v510, %v509
    %527 = vmatpush.bf16.msra.mxu0 %v518
    %528 = vmatpush.bf16.msra.mxu0 %v517
    %529 = vmatpush.bf16.msra.mxu0 %v516
    %530 = vmatpush.bf16.msra.mxu0 %v515
    %531 = vmatpush.bf16.msra.mxu0 %v514
    %532 = vmatpush.bf16.msra.mxu0 %v513
    %533 = vmatpush.bf16.msra.mxu0 %v512
    %534 = vmatpush.bf16.msra.mxu0 %v511
    %535 = vmatmul.bf16.gmra.mxu0 %v458
    %v536 = vpop.f32.mrf.mxu0
    %v537 = vadd.f32 %v477, %v536
    %v538 = vpop.f32.mrf.mxu0
    %539 = vdwg.mxu0
    %540 = vst [vmem:[%s6] sm:$0xff] %v537
    // Predicated region
    $region34: #{rnn_single_forward.1} parent=1 // pred_check
      _
    $region35: #{rnn_single_forward.1} parent=1 // pred_check_branch
      %542 = sbr.rel (0) target = $region37
    $region36: #{rnn_single_forward.1} parent=1 // pred_region
      _
    $region37: #{rnn_single_forward.1} parent=1 // pred_fallthru
      _
    // Predicated region
    $region38: #{rnn_single_forward.1} parent=1 // pred_check
      _
    $region39: #{rnn_single_forward.1} parent=1 // pred_check_branch
      %544 = sbr.rel (0) target = $region41
    $region40: #{rnn_single_forward.1} parent=1 // pred_region
      _
    $region41: #{rnn_single_forward.1} parent=1 // pred_fallthru
      _
    // Predicated region
    $region42: #{rnn_single_forward.1} parent=1 // pred_check
      _
    $region43: #{rnn_single_forward.1} parent=1 // pred_check_branch
      %546 = sbr.rel (0) target = $region45
    $region44: #{rnn_single_forward.1} parent=1 // pred_region
      _
    $region45: #{rnn_single_forward.1} parent=1 // pred_fallthru
      _
    // Predicated region
    $region46: #{rnn_single_forward.1} parent=1 // pred_check
      _
    $region47: #{rnn_single_forward.1} parent=1 // pred_check_branch
      %548 = sbr.rel (0) target = $region49
    $region48: #{rnn_single_forward.1} parent=1 // pred_region
      _
    $region49: #{rnn_single_forward.1} parent=1 // pred_fallthru
      _
    %549 = vsyncpa [#allocation3], 1
    %550 = vsyncpa [#allocation5], 1

</llo_original>
